<compile_context>
chip_gen: v7x
topology: tpu7x:2x2x1
jax: 0.10.0
libtpu: 0.0.40
codegen_flags: <defaults>
</compile_context>

<pallas_src>
import functools

import jax
import jax.numpy as jnp
from jax.experimental import pallas as pl
from jax.experimental.pallas import tpu as pltpu

_EPS = 1e-6  # matches torch.nn.functional.pairwise_distance default eps


def _triplet_loss_kernel(a_ref, p_ref, n_ref, o_ref, acc_ref, *,
                         margin, total_b, tile_b):
    step = pl.program_id(0)

    @pl.when(step == 0)
    def _init():
        acc_ref[...] = jnp.zeros_like(acc_ref)

    # Stream the (TB, D) tiles; cast to f32 inside the kernel only.
    a = a_ref[...].astype(jnp.float32)
    p = p_ref[...].astype(jnp.float32)
    n = n_ref[...].astype(jnp.float32)

    # torch F.pairwise_distance(x, y, p=2): ||x - y + eps||_2 per row.
    dpos = jnp.sqrt(jnp.sum((a - p + _EPS) ** 2, axis=-1, keepdims=True))  # (TB, 1)
    dneg = jnp.sqrt(jnp.sum((a - n + _EPS) ** 2, axis=-1, keepdims=True))  # (TB, 1)
    losses = jnp.maximum(dpos - dneg + margin, 0.0)                        # (TB, 1)

    # Mask padded rows of the (possibly ragged) last tile out of the sum.
    if total_b % tile_b != 0:
        row = jax.lax.broadcasted_iota(jnp.int32, (tile_b, 1), 0) + step * tile_b
        losses = jnp.where(row < total_b, losses, 0.0)

    # Per-tile partial sum, accumulated in a (1, 1) f32 VMEM scratch.
    acc_ref[...] += jnp.sum(losses, keepdims=True)

    @pl.when(step == pl.num_programs(0) - 1)
    def _finalize():
        # Mean over the TRUE batch size, not the (padded) tile size.
        o_ref[0, 0] = jnp.sum(acc_ref[...]) / jnp.float32(total_b)


def _round_up(x, m):
    return ((x + m - 1) // m) * m


def triplet_loss(rep_anchor, rep_pos, rep_neg, triplet_margin=5.0,
                 max_tile_rows=None):
    """Pallas equivalent of TripletLoss(EUCLIDEAN, margin).forward(...)."""
    assert rep_anchor.shape == rep_pos.shape == rep_neg.shape
    assert rep_anchor.dtype == rep_pos.dtype == rep_neg.dtype
    B, D = rep_anchor.shape
    itemsize = jnp.dtype(rep_anchor.dtype).itemsize

    # Tile sizing: 3 inputs x 2 pipeline buffers x (TB x D) must fit an ~8 MiB
    # budget (safely under the smallest default scoped-VMEM limit, v5e's 16 MiB
    # and v7x's 32 MiB). Round to a multiple of 8 sublanes; never exceed the
    # (sublane-padded) batch.
    vmem_budget = 8 * 1024 * 1024
    tb = vmem_budget // (6 * max(D, 1) * itemsize)
    tb = max(8, min((tb // 8) * 8, 2048))
    if max_tile_rows is not None:
        tb = min(tb, max(8, _round_up(int(max_tile_rows), 8)))
    tb = min(tb, _round_up(B, 8))

    grid = (pl.cdiv(B, tb),)

    kernel = functools.partial(
        _triplet_loss_kernel,
        margin=float(triplet_margin),
        total_b=int(B),
        tile_b=int(tb),
    )

    out = pl.pallas_call(
        kernel,
        out_shape=jax.ShapeDtypeStruct((1, 1), jnp.float32),
        grid=grid,
        in_specs=[
            pl.BlockSpec((tb, D), lambda i: (i, 0), memory_space=pltpu.VMEM),
            pl.BlockSpec((tb, D), lambda i: (i, 0), memory_space=pltpu.VMEM),
            pl.BlockSpec((tb, D), lambda i: (i, 0), memory_space=pltpu.VMEM),
        ],
        out_specs=pl.BlockSpec(memory_space=pltpu.SMEM),
        scratch_shapes=[pltpu.VMEM((1, 1), jnp.float32)],
        compiler_params=pltpu.CompilerParams(
            dimension_semantics=("arbitrary",),  # streaming reduction axis
        ),
    )(rep_anchor, rep_pos, rep_neg)
    return out[0, 0]


def _reference_triplet_loss(a, p, n, margin=5.0):
    a = a.astype(jnp.float32)
    p = p.astype(jnp.float32)
    n = n.astype(jnp.float32)
    dpos = jnp.sqrt(jnp.sum((a - p + _EPS) ** 2, axis=-1))
    dneg = jnp.sqrt(jnp.sum((a - n + _EPS) ** 2, axis=-1))
    return jnp.mean(jnp.maximum(dpos - dneg + margin, 0.0))


if __name__ == "__main__":
    key = jax.random.PRNGKey(0)

    # --- main check: the module's nominal small size (single tile) ---
    B, D = 8, 32
    k1, k2, k3 = jax.random.split(key, 3)
    rep_anchor = jax.random.normal(k1, (B, D), dtype=jnp.float32)
    rep_pos = jax.random.normal(k2, (B, D), dtype=jnp.float32)
    rep_neg = jax.random.normal(k3, (B, D), dtype=jnp.float32)

    loss = triplet_loss(rep_anchor, rep_pos, rep_neg, triplet_margin=5.0)
    loss = jax.block_until_ready(loss)
    ref = _reference_triplet_loss(rep_anchor, rep_pos, rep_neg, margin=5.0)
    assert jnp.allclose(loss, ref, rtol=1e-5, atol=1e-5), (loss, ref)

    # --- multi-tile streaming path (forces grid > 1) ---
    B2 = 48
    k4, k5, k6 = jax.random.split(jax.random.PRNGKey(1), 3)
    a2 = jax.random.normal(k4, (B2, D), dtype=jnp.float32)
    p2 = jax.random.normal(k5, (B2, D), dtype=jnp.float32)
    n2 = jax.random.normal(k6, (B2, D), dtype=jnp.float32)
    loss2 = jax.block_until_ready(
        triplet_loss(a2, p2, n2, triplet_margin=5.0, max_tile_rows=16))
    ref2 = _reference_triplet_loss(a2, p2, n2, margin=5.0)
    assert jnp.allclose(loss2, ref2, rtol=1e-5, atol=1e-5), (loss2, ref2)

    # --- ragged-batch path (B not a multiple of the tile -> masking) ---
    B3 = 20
    k7, k8, k9 = jax.random.split(jax.random.PRNGKey(2), 3)
    a3 = jax.random.normal(k7, (B3, D), dtype=jnp.float32)
    p3 = jax.random.normal(k8, (B3, D), dtype=jnp.float32)
    n3 = jax.random.normal(k9, (B3, D), dtype=jnp.float32)
    loss3 = jax.block_until_ready(
        triplet_loss(a3, p3, n3, triplet_margin=5.0, max_tile_rows=16))
    ref3 = _reference_triplet_loss(a3, p3, n3, margin=5.0)
    assert jnp.allclose(loss3, ref3, rtol=1e-5, atol=1e-5), (loss3, ref3)

    print("KERNEL_OK")
</pallas_src>

<mosaic_0001>
module attributes {stable_mosaic.version = 11 : i64} {
  func.func @_triplet_loss_kernel(%arg0: i32, %arg1: memref<8x32xf32, #tpu.memory_space<vmem>>, %arg2: memref<8x32xf32, #tpu.memory_space<vmem>>, %arg3: memref<8x32xf32, #tpu.memory_space<vmem>>, %arg4: memref<1x1xf32, #tpu.memory_space<smem>>, %arg5: memref<1x1xf32, #tpu.memory_space<vmem>>) attributes {dimension_semantics = [#tpu.dimension_semantics<arbitrary>], iteration_bounds = array<i64: 1>, scalar_prefetch = 0 : i64, scratch_operands = 1 : i64, tpu.core_type = #tpu.core_type<tc>, window_params = [{transform_indices = @transform_0, window_bounds = array<i64: 8, 32>}, {transform_indices = @transform_1, window_bounds = array<i64: 8, 32>}, {transform_indices = @transform_2, window_bounds = array<i64: 8, 32>}, {transform_indices = @transform_3, window_bounds = array<i64: 1, 1>}]} {
    %c0_i32 = arith.constant 0 : i32
    %0 = arith.cmpi eq, %arg0, %c0_i32 : i32
    %1 = arith.extui %0 : i1 to i32
    %c0_i32_0 = arith.constant 0 : i32
    %2 = arith.cmpi ne, %1, %c0_i32_0 : i32
    scf.if %2 {
      %cst_18 = arith.constant 0.000000e+00 : f32
      %36 = vector.broadcast %cst_18 : f32 to vector<1x1xf32>
      %c0_19 = arith.constant 0 : index
      %c0_20 = arith.constant 0 : index
      %37 = vector.load %arg5[%c0_19, %c0_20] : memref<1x1xf32, #tpu.memory_space<vmem>>, vector<1x1xf32>
      tpu.vector_store %arg5[%c0_19, %c0_20], %36 {strides = array<i32>} : memref<1x1xf32, #tpu.memory_space<vmem>>, vector<1x1xf32>,
    } else {
    }
    %c0 = arith.constant 0 : index
    %c0_1 = arith.constant 0 : index
    %3 = vector.load %arg1[%c0, %c0_1] : memref<8x32xf32, #tpu.memory_space<vmem>>, vector<8x32xf32>
    %c0_2 = arith.constant 0 : index
    %c0_3 = arith.constant 0 : index
    %4 = vector.load %arg2[%c0_2, %c0_3] : memref<8x32xf32, #tpu.memory_space<vmem>>, vector<8x32xf32>
    %c0_4 = arith.constant 0 : index
    %c0_5 = arith.constant 0 : index
    %5 = vector.load %arg3[%c0_4, %c0_5] : memref<8x32xf32, #tpu.memory_space<vmem>>, vector<8x32xf32>
    %6 = arith.subf %3, %4 : vector<8x32xf32>
    %cst = arith.constant 9.99999997E-7 : f32
    %7 = vector.broadcast %cst : f32 to vector<8x32xf32>
    %8 = arith.addf %6, %7 : vector<8x32xf32>
    %9 = arith.mulf %8, %8 : vector<8x32xf32>
    %cst_6 = arith.constant dense<0.000000e+00> : vector<8xf32>
    %10 = vector.multi_reduction <add>, %9, %cst_6 [1] : vector<8x32xf32> to vector<8xf32>
    %11 = vector.shape_cast %10 : vector<8xf32> to vector<8x1xf32>
    %12 = math.sqrt %11 : vector<8x1xf32>
    %13 = arith.subf %3, %5 : vector<8x32xf32>
    %cst_7 = arith.constant 9.99999997E-7 : f32
    %14 = vector.broadcast %cst_7 : f32 to vector<8x32xf32>
    %15 = arith.addf %13, %14 : vector<8x32xf32>
    %16 = arith.mulf %15, %15 : vector<8x32xf32>
    %cst_8 = arith.constant dense<0.000000e+00> : vector<8xf32>
    %17 = vector.multi_reduction <add>, %16, %cst_8 [1] : vector<8x32xf32> to vector<8xf32>
    %18 = vector.shape_cast %17 : vector<8xf32> to vector<8x1xf32>
    %19 = math.sqrt %18 : vector<8x1xf32>
    %20 = arith.subf %12, %19 : vector<8x1xf32>
    %cst_9 = arith.constant 5.000000e+00 : f32
    %21 = vector.broadcast %cst_9 : f32 to vector<8x1xf32>
    %22 = arith.addf %20, %21 : vector<8x1xf32>
    %cst_10 = arith.constant 0.000000e+00 : f32
    %23 = vector.broadcast %cst_10 : f32 to vector<8x1xf32>
    %24 = arith.maximumf %22, %23 : vector<8x1xf32>
    %c0_11 = arith.constant 0 : index
    %c0_12 = arith.constant 0 : index
    %25 = vector.load %arg5[%c0_11, %c0_12] : memref<1x1xf32, #tpu.memory_space<vmem>>, vector<1x1xf32>
    %26 = vector.shape_cast %24 : vector<8x1xf32> to vector<1x8x1xf32>
    %cst_13 = arith.constant dense<0.000000e+00> : vector<1xf32>
    %27 = vector.multi_reduction <add>, %26, %cst_13 [1, 2] : vector<1x8x1xf32> to vector<1xf32>
    %28 = vector.shape_cast %27 : vector<1xf32> to vector<1x1x1xf32>
    %29 = vector.extract %28[0, 0, 0] : f32 from vector<1x1x1xf32>
    %30 = vector.broadcast %29 : f32 to vector<1x1xf32>
    %31 = arith.addf %25, %30 : vector<1x1xf32>
    %c0_14 = arith.constant 0 : index
    %c0_15 = arith.constant 0 : index
    %32 = vector.load %arg5[%c0_14, %c0_15] : memref<1x1xf32, #tpu.memory_space<vmem>>, vector<1x1xf32>
    tpu.vector_store %arg5[%c0_14, %c0_15], %31 {strides = array<i32>} : memref<1x1xf32, #tpu.memory_space<vmem>>, vector<1x1xf32>,
    %c0_i32_16 = arith.constant 0 : i32
    %33 = arith.cmpi eq, %arg0, %c0_i32_16 : i32
    %34 = arith.extui %33 : i1 to i32
    %c0_i32_17 = arith.constant 0 : i32
    %35 = arith.cmpi ne, %34, %c0_i32_17 : i32
    scf.if %35 {
      %c0_18 = arith.constant 0 : index
      %c0_19 = arith.constant 0 : index
      %36 = vector.load %arg5[%c0_18, %c0_19] : memref<1x1xf32, #tpu.memory_space<vmem>>, vector<1x1xf32>
      %37 = vector.shape_cast %36 : vector<1x1xf32> to vector<1x1x1xf32>
      %cst_20 = arith.constant dense<0.000000e+00> : vector<1xf32>
      %38 = vector.multi_reduction <add>, %37, %cst_20 [1, 2] : vector<1x1x1xf32> to vector<1xf32>
      %39 = vector.shape_cast %38 : vector<1xf32> to vector<1x1x1xf32>
      %40 = vector.extract %39[0, 0, 0] : f32 from vector<1x1x1xf32>
      %cst_21 = arith.constant 8.000000e+00 : f32
      %41 = arith.divf %40, %cst_21 : f32
      %c0_22 = arith.constant 0 : index
      %c0_23 = arith.constant 0 : index
      %42 = memref.load %arg4[%c0_22, %c0_23] : memref<1x1xf32, #tpu.memory_space<smem>>
      memref.store %41, %arg4[%c0_22, %c0_23] : memref<1x1xf32, #tpu.memory_space<smem>>
    } else {
    }
    return
  }
  func.func @transform_0(%arg0: i32) -> (i32, i32) {
    %c0_i32 = arith.constant 0 : i32
    %c0_i32_0 = arith.constant 0 : i32
    return %arg0, %c0_i32 : i32, i32
  }
  func.func @transform_1(%arg0: i32) -> (i32, i32) {
    %c0_i32 = arith.constant 0 : i32
    %c0_i32_0 = arith.constant 0 : i32
    return %arg0, %c0_i32 : i32, i32
  }
  func.func @transform_2(%arg0: i32) -> (i32, i32) {
    %c0_i32 = arith.constant 0 : i32
    %c0_i32_0 = arith.constant 0 : i32
    return %arg0, %c0_i32 : i32, i32
  }
  func.func @transform_3(%arg0: i32) -> (i32, i32) {
    %c0_i32 = arith.constant 0 : i32
    %c0_i32_0 = arith.constant 0 : i32
    %c0_i32_1 = arith.constant 0 : i32
    return %c0_i32, %c0_i32_0 : i32, i32
  }
}

</mosaic_0001>

<llo_original>
// kernel: tpu_custom_call.1
$region0: #{tpu_custom_call.1}
  #allocation0 [shape = 'u32[]', space=smem, size = 0x4, offset = 0x4, fixed_abs, tag = 'smem constant byte address 0x4 - core index']
  #allocation1 [shape = 'u32[144,128]{1,0:T(1,128)}', space=vmem, size = 0x12000, scoped, tag = 'internal scratch']
  #allocation2 [shape = 'f32[1,1]{1,0:T(1,128)}', space=vmem, size = 0x200, scoped, tag = 'scratch operand']
  %s0 = inlined_call_operand.hbm [shape: f32[8,32], index: 0, kind: input, shape index: {}]
  %s1 = inlined_call_operand.hbm [shape: f32[8,32], index: 1, kind: input, shape index: {}]
  %s2 = inlined_call_operand.hbm [shape: f32[8,32], index: 2, kind: input, shape index: {}]
  %s3 = inlined_call_operand.hbm [shape: f32[1,1], index: 3, kind: output, shape index: {}]
  %s4 = sld [smem:[#allocation0]]
  $region42: #{tpu_custom_call.1} parent=0
    _
  %s6 = ssub.s32 1, %s4
  %s7 = scalar_select 0, %s6, %s4
  $region1: #{tpu_custom_call.1} parent=0
    #allocation3 [shape = 'u8[4096]{0}', space=vmem, size = 0x1000, scoped, tag = 'input window, operand 0, single buffered']
    #allocation4 [shape = 's32[1]{0}', space=sflag, size = 0x4, scoped, tag = 'scoped memory for tpu_custom_call.1']
    #allocation5 [shape = 's32[1]{0}', space=sflag, size = 0x4, scoped, tag = 'scoped memory for tpu_custom_call.1']
    #allocation6 [shape = 'u8[4096]{0}', space=vmem, size = 0x1000, scoped, tag = 'input window, operand 1, single buffered']
    #allocation7 [shape = 's32[1]{0}', space=sflag, size = 0x4, scoped, tag = 'scoped memory for tpu_custom_call.1']
    #allocation8 [shape = 'u8[4096]{0}', space=vmem, size = 0x1000, scoped, tag = 'input window, operand 2, single buffered']
    #allocation9 [shape = 'u8[512]{0}', space=smem, size = 0x200, scoped, tag = 'output window, operand 0, single buffered']
    %8 = vsyncpa [#allocation4], 0
    %9 = vsyncpa [#allocation7], 0
    %10 = vsyncpa [#allocation5], 0
    // Predicated region
    $region2: #{tpu_custom_call.1} parent=1 // pred_check
      _
    $region3: #{tpu_custom_call.1} parent=1 // pred_check_branch
      %12 = sbr.rel (0) target = $region5
    $region4: #{tpu_custom_call.1} parent=1 // pred_region
      %s14 = ssub.s32 128, 128
      %15 = vsyncadd [#allocation4], %s14
      %s17 = sshll.u32 [#allocation3], 4
      %s18 = int_to_ptr.vmem [resolvable:$true] %s17
      %20 = dma.hbm_to_vmem [thread:$0]  %s0, 128, %s18, [#allocation4]
    $region5: #{tpu_custom_call.1} parent=1 // pred_fallthru
      _
    // Predicated region
    $region6: #{tpu_custom_call.1} parent=1 // pred_check
      _
    $region7: #{tpu_custom_call.1} parent=1 // pred_check_branch
      %22 = sbr.rel (0) target = $region9
    $region8: #{tpu_custom_call.1} parent=1 // pred_region
      %s24 = ssub.s32 128, 128
      %25 = vsyncadd [#allocation7], %s24
      %s27 = sshll.u32 [#allocation6], 4
      %s28 = int_to_ptr.vmem [resolvable:$true] %s27
      %30 = dma.hbm_to_vmem [thread:$0]  %s1, 128, %s28, [#allocation7]
    $region9: #{tpu_custom_call.1} parent=1 // pred_fallthru
      _
    // Predicated region
    $region10: #{tpu_custom_call.1} parent=1 // pred_check
      _
    $region11: #{tpu_custom_call.1} parent=1 // pred_check_branch
      %32 = sbr.rel (0) target = $region13
    $region12: #{tpu_custom_call.1} parent=1 // pred_region
      %s34 = ssub.s32 128, 128
      %35 = vsyncadd [#allocation7], %s34
      %s37 = sshll.u32 [#allocation8], 4
      %s38 = int_to_ptr.vmem [resolvable:$true] %s37
      %40 = dma.hbm_to_vmem [thread:$0]  %s2, 128, %s38, [#allocation7]
    $region13: #{tpu_custom_call.1} parent=1 // pred_fallthru
      _
    // Predicated region
    $region14: #{tpu_custom_call.1} parent=1 // pred_check
      _
    $region15: #{tpu_custom_call.1} parent=1 // pred_check_branch
      %42 = sbr.rel (0) target = $region17
    $region16: #{tpu_custom_call.1} parent=1 // pred_region
      %43 = dma.done [#allocation4], 128
    $region17: #{tpu_custom_call.1} parent=1 // pred_fallthru
      _
    // Predicated region
    $region18: #{tpu_custom_call.1} parent=1 // pred_check
      _
    $region19: #{tpu_custom_call.1} parent=1 // pred_check_branch
      %45 = sbr.rel (0) target = $region21
    $region20: #{tpu_custom_call.1} parent=1 // pred_region
      %46 = dma.done [#allocation7], 128
    $region21: #{tpu_custom_call.1} parent=1 // pred_fallthru
      _
    // Predicated region
    $region22: #{tpu_custom_call.1} parent=1 // pred_check
      _
    $region23: #{tpu_custom_call.1} parent=1 // pred_check_branch
      %48 = sbr.rel (0) target = $region25
    $region24: #{tpu_custom_call.1} parent=1 // pred_region
      %49 = dma.done [#allocation7], 128
    $region25: #{tpu_custom_call.1} parent=1 // pred_fallthru
      _
    %p50 = scmp.eq.s32.totalorder 0, 0
    // Predicated region
    $region26: #{tpu_custom_call.1} parent=1 // pred_check
      %p51 = pneg %p50
    $region27: #{tpu_custom_call.1} parent=1 // pred_check_branch
      %53 = sbr.rel (%p51) target = $region29
    $region28: #{tpu_custom_call.1} parent=1 // pred_region
      %vm54 = vcmask 0
      %55 = vst.msk [vmem:[#allocation2] sm:$0x1] %vm54, 0.0
    $region29: #{tpu_custom_call.1} parent=1 // pred_fallthru
      _
    %v56 = vld [vmem:[#allocation3] sm:$0xff]
    %v57 = vld [vmem:[#allocation6] sm:$0xff]
    %v58 = vld [vmem:[#allocation8] sm:$0xff]
    %v59 = vsub.f32 %v56, %v57
    %v60 = vadd.f32 %v59, 1e-06
    %v61 = vmul.f32 %v60, %v60
    %vm62 = vcmask 261120
    %v63 = vsel %vm62, %v61, 0.0
    %64 = vadd.xlane.f32.xlu0 %v63
    %v65 = vpop.xlane.xlu0 %64
    %v66 = vrsqrt.pop %v65
    %v67 = vmul.f32 %v65, %v66
    %vm68 = vcmp.eq.f32.partialorder %v65, inf
    %v69 = vsel %vm68, %v65, %v67
    %vm70 = vcmp.eq.f32.partialorder %v65, 0.0
    %v71 = vand.u32 %v65, 2147483648
    %v72 = vsel %vm70, %v71, %v69
    %v73 = vsub.f32 %v56, %v58
    %v74 = vadd.f32 %v73, 1e-06
    %v75 = vmul.f32 %v74, %v74
    %v76 = vsel %vm62, %v75, 0.0
    %77 = vadd.xlane.f32.xlu0 %v76
    %v78 = vpop.xlane.xlu0 %77
    %v79 = vrsqrt.pop %v78
    %v80 = vmul.f32 %v78, %v79
    %vm81 = vcmp.eq.f32.partialorder %v78, inf
    %v82 = vsel %vm81, %v78, %v80
    %vm83 = vcmp.eq.f32.partialorder %v78, 0.0
    %v84 = vand.u32 %v78, 2147483648
    %v85 = vsel %vm83, %v84, %v82
    %v86 = vsub.f32 %v72, %v85
    %v87 = vadd.f32 %v86, 5.0
    %v88 = vmax.f32 %v87, 0.0
    %v89 = vld [vmem:[#allocation2] sm:$0x1]
    %vm90 = vcmask 7168
    %v91 = vsel %vm90, %v88, 0.0
    %92 = vadd.xlane.f32.xlu0 %v91
    %v93 = vpop.xlane.xlu0 %92
    %v94 = vrot.slane %v93, 4
    %v95 = vadd.f32 %v93, %v94
    %v96 = vrot.slane %v95, 2
    %v97 = vadd.f32 %v95, %v96
    %v98 = vrot.slane %v97, 1
    %v99 = vadd.f32 %v97, %v98
    %s100 = vtos %v99
    %v101 = vstv %s100
    %v102 = vadd.f32 %v89, %v101
    %vm103 = vcmask 0
    %104 = vst.msk [vmem:[#allocation2] sm:$0x1] %vm103, %v102
    // Predicated region
    $region30: #{tpu_custom_call.1} parent=1 // pred_check
      %p105 = pneg %p50
    $region31: #{tpu_custom_call.1} parent=1 // pred_check_branch
      %107 = sbr.rel (%p105) target = $region33
    $region32: #{tpu_custom_call.1} parent=1 // pred_region
      %v108 = vld [vmem:[#allocation2] sm:$0x1]
      %v109 = vadd.f32 %v108, 0.0
      %s110 = vtos %v109
      %v111 = vrcp.pop 8.0
      %s112 = vtos %v111
      %s113 = smul.f32 %s110, %s112
      %s114 = scalar_lea.smem [#allocation9], 0
      %115 = sst [smem:[%s114]] %s113
    $region33: #{tpu_custom_call.1} parent=1 // pred_fallthru
      _
    // Predicated region
    $region34: #{tpu_custom_call.1} parent=1 // pred_check
      _
    $region35: #{tpu_custom_call.1} parent=1 // pred_check_branch
      %117 = sbr.rel (0) target = $region37
    $region36: #{tpu_custom_call.1} parent=1 // pred_region
      %s119 = ssub.s32 16, 16
      %120 = vsyncadd [#allocation5], %s119
      %123 = dma.smem_to_hbm [#allocation9], 16, %s3, [#allocation5]
    $region37: #{tpu_custom_call.1} parent=1 // pred_fallthru
      _
    // Predicated region
    $region38: #{tpu_custom_call.1} parent=1 // pred_check
      _
    $region39: #{tpu_custom_call.1} parent=1 // pred_check_branch
      %125 = sbr.rel (0) target = $region41
    $region40: #{tpu_custom_call.1} parent=1 // pred_region
      %126 = dma.done [#allocation5], 16
    $region41: #{tpu_custom_call.1} parent=1 // pred_fallthru
      _
    %127 = sfence
    %128 = vsyncpa [#allocation4], 1
    %129 = vsyncpa [#allocation7], 1
    %130 = vsyncpa [#allocation5], 1

</llo_original>
